<compile_context>
chip_gen: v5e
topology: v5e:2x2
jax: 0.10.0
libtpu: 0.0.40
codegen_flags: <defaults>
</compile_context>

<pallas_src>
import numpy as np
import jax
import jax.numpy as jnp
from jax.experimental import pallas as pl
from jax.experimental.pallas import tpu as pltpu

# Unflatten has no parameters (channels / dims are static config).
CHANNELS = 32
DIMS = 4


def _copy_kernel(x_ref, o_ref):
    # Flat lane-dense identity copy: pure vld -> vst stream, no casts,
    # no masks (except the final partial block), no cross-lane relayout.
    o_ref[...] = x_ref[...]


def unflatten(x, channels=CHANNELS, dims=DIMS, *,
              block_rows=2048, force_kernel=False):
    """x: (B, channels*dims*dims) -> (B, channels, dims, dims)  [NCHW].

    Default path is a metadata-only reshape (the correct implementation of
    torch's .view on a contiguous tensor).  Set force_kernel=True to route
    through the standalone Pallas copy kernel (fallback / testing).
    """
    B, F = x.shape
    assert F == channels * dims * dims, (F, channels, dims)

    out_shape_4d = (B, channels, dims, dims)

    # --- Fast path: view, zero bytes moved, zero launch overhead. ---------
    if not force_kernel:
        return jnp.reshape(x, out_shape_4d)

    # --- Fallback: standalone lane-dense Pallas copy. ---------------------
    # Feature dim must be lane-dense for full unmasked stores.
    assert F % 128 == 0, "feature dim must be a multiple of 128 for the kernel"

    # Batch tile: whole array if it fits, otherwise block_rows (2048 is a
    # multiple of the sublane pack for f32/bf16/int8 alike).  At F=512 f32,
    # tb=2048 -> 4 MiB per buffer; 2 in + 2 out double-buffered = 16 MiB,
    # well under v7x's 32 MiB scoped default and 64 MiB physical VMEM.
    tb = B if B <= block_rows else block_rows

    itemsize = jnp.dtype(x.dtype).itemsize
    block_bytes = tb * F * itemsize
    # 4 pipeline buffers (in + out, double-buffered) plus generous headroom.
    vmem_budget = min(64 << 20, 4 * block_bytes + (8 << 20))

    flat = pl.pallas_call(
        _copy_kernel,
        out_shape=jax.ShapeDtypeStruct((B, F), x.dtype),
        grid=(pl.cdiv(B, tb),),
        in_specs=[pl.BlockSpec((tb, F), lambda i: (i, 0))],
        out_specs=pl.BlockSpec((tb, F), lambda i: (i, 0)),
        compiler_params=pltpu.CompilerParams(
            dimension_semantics=("parallel",),
            vmem_limit_bytes=vmem_budget,
        ),
        # Pure bandwidth op: no flops, just a read + write stream.
        cost_estimate=pl.CostEstimate(
            flops=0, transcendentals=0,
            bytes_accessed=2 * B * F * itemsize),
    )(x)

    # Metadata-only row-major reshape (== torch .view on contiguous data).
    return jnp.reshape(flat, out_shape_4d)


if __name__ == "__main__":
    key = jax.random.PRNGKey(0)

    # --- Small-shape test, default (view) path ----------------------------
    B = 2
    x = jax.random.normal(key, (B, CHANNELS * DIMS * DIMS), dtype=jnp.float32)
    x_host = np.asarray(x)
    y_ref = x_host.reshape(B, CHANNELS, DIMS, DIMS)

    y = jax.block_until_ready(unflatten(x))
    assert y.shape == (B, CHANNELS, DIMS, DIMS), y.shape
    assert y.dtype == jnp.float32
    assert np.array_equal(np.asarray(y), y_ref), "view path mismatch"

    # --- Exercise the Pallas kernel path once (same shapes) ---------------
    yk = jax.block_until_ready(unflatten(x, force_kernel=True))
    assert yk.shape == (B, CHANNELS, DIMS, DIMS), yk.shape
    assert np.array_equal(np.asarray(yk), y_ref), "kernel path mismatch"

    # --- Kernel path with a non-divisible batch tile (partial last block) -
    B2 = 10
    x2 = jax.random.normal(jax.random.PRNGKey(1),
                           (B2, CHANNELS * DIMS * DIMS), dtype=jnp.float32)
    y2_ref = np.asarray(x2).reshape(B2, CHANNELS, DIMS, DIMS)
    y2 = jax.block_until_ready(
        unflatten(x2, force_kernel=True, block_rows=8))
    assert y2.shape == (B2, CHANNELS, DIMS, DIMS), y2.shape
    assert np.array_equal(np.asarray(y2), y2_ref), "partial-block mismatch"

    print("KERNEL_OK")
</pallas_src>

<mosaic_0001>
module attributes {stable_mosaic.version = 11 : i64} {
  func.func @_copy_kernel(%arg0: i32, %arg1: memref<2x512xf32, #tpu.memory_space<vmem>>, %arg2: memref<2x512xf32, #tpu.memory_space<vmem>>) attributes {dimension_semantics = [#tpu.dimension_semantics<parallel>], iteration_bounds = array<i64: 1>, scalar_prefetch = 0 : i64, scratch_operands = 0 : i64, tpu.core_type = #tpu.core_type<tc>, window_params = [{transform_indices = @transform_0, window_bounds = array<i64: 2, 512>}, {transform_indices = @transform_1, window_bounds = array<i64: 2, 512>}]} {
    %c0 = arith.constant 0 : index
    %c0_0 = arith.constant 0 : index
    %0 = vector.load %arg1[%c0, %c0_0] : memref<2x512xf32, #tpu.memory_space<vmem>>, vector<2x512xf32>
    %c0_1 = arith.constant 0 : index
    %c0_2 = arith.constant 0 : index
    %1 = vector.load %arg2[%c0_1, %c0_2] : memref<2x512xf32, #tpu.memory_space<vmem>>, vector<2x512xf32>
    tpu.vector_store %arg2[%c0_1, %c0_2], %0 {strides = array<i32>} : memref<2x512xf32, #tpu.memory_space<vmem>>, vector<2x512xf32>,
    return
  }
  func.func @transform_0(%arg0: i32) -> (i32, i32) {
    %c0_i32 = arith.constant 0 : i32
    %c0_i32_0 = arith.constant 0 : i32
    return %arg0, %c0_i32 : i32, i32
  }
  func.func @transform_1(%arg0: i32) -> (i32, i32) {
    %c0_i32 = arith.constant 0 : i32
    %c0_i32_0 = arith.constant 0 : i32
    return %arg0, %c0_i32 : i32, i32
  }
}

</mosaic_0001>

<llo_original>
// kernel: tpu_custom_call.1
$region0: #{tpu_custom_call.1}
  #allocation0 [shape = 'u32[]', space=smem, size = 0x4, offset = 0x4, fixed_abs, tag = 'smem constant byte address 0x4 - core index']
  #allocation1 [shape = 'u32[72,128]{1,0:T(1,128)}', space=vmem, size = 0x9000, scoped, tag = 'internal scratch']
  %s0 = inlined_call_operand.hbm [shape: f32[2,512], index: 0, kind: input, shape index: {}]
  %s1 = inlined_call_operand.hbm [shape: f32[2,512], index: 1, kind: output, shape index: {}]
  %s2 = sld [smem:[#allocation0]]
  $region18: #{tpu_custom_call.1} parent=0
    _
  %s4 = ssub.s32 1, %s2
  %s5 = scalar_select 0, %s4, %s2
  $region1: #{tpu_custom_call.1} parent=0
    #allocation2 [shape = 'u8[4096]{0}', space=vmem, size = 0x1000, scoped, tag = 'input window, operand 0, single buffered']
    #allocation3 [shape = 's32[1]{0}', space=sflag, size = 0x4, scoped, tag = 'scoped memory for tpu_custom_call.1']
    #allocation4 [shape = 's32[1]{0}', space=sflag, size = 0x4, scoped, tag = 'scoped memory for tpu_custom_call.1']
    #allocation5 [shape = 'u8[4096]{0}', space=vmem, size = 0x1000, scoped, tag = 'output window, operand 0, single buffered']
    %6 = vsyncpa [#allocation3], 0
    %7 = vsyncpa [#allocation4], 0
    // Predicated region
    $region2: #{tpu_custom_call.1} parent=1 // pred_check
      _
    $region3: #{tpu_custom_call.1} parent=1 // pred_check_branch
      %9 = sbr.rel (0) target = $region5
    $region4: #{tpu_custom_call.1} parent=1 // pred_region
      %11 = vsyncadd [#allocation3], 0
      %s13 = sshll.u32 %s0, 4
      %s14 = int_to_ptr.hbm [resolvable:$true] %s13
      %s15 = sshll.u32 [#allocation2], 4
      %s16 = int_to_ptr.vmem [resolvable:$true] %s15
      %18 = dma.hbm_to_vmem [thread:$0]  %s14, 128, %s16, [#allocation3]
    $region5: #{tpu_custom_call.1} parent=1 // pred_fallthru
      _
    // Predicated region
    $region6: #{tpu_custom_call.1} parent=1 // pred_check
      _
    $region7: #{tpu_custom_call.1} parent=1 // pred_check_branch
      %20 = sbr.rel (0) target = $region9
    $region8: #{tpu_custom_call.1} parent=1 // pred_region
      %22 = dma.done [#allocation3], 128
    $region9: #{tpu_custom_call.1} parent=1 // pred_fallthru
      _
    %v23 = vld [vmem:[#allocation2] sm:$0xff]
    %24 = vst [vmem:[#allocation5] sm:$0xff] %v23
    // Predicated region
    $region10: #{tpu_custom_call.1} parent=1 // pred_check
      _
    $region11: #{tpu_custom_call.1} parent=1 // pred_check_branch
      %26 = sbr.rel (0) target = $region13
    $region12: #{tpu_custom_call.1} parent=1 // pred_region
      %28 = vsyncadd [#allocation4], 0
      %s30 = sshll.u32 [#allocation5], 4
      %s31 = int_to_ptr.vmem [resolvable:$true] %s30
      %s32 = sshll.u32 %s1, 4
      %s33 = int_to_ptr.hbm [resolvable:$true] %s32
      %35 = dma.vmem_to_hbm [thread:$0]  %s31, 128, %s33, [#allocation4]
    $region13: #{tpu_custom_call.1} parent=1 // pred_fallthru
      _
    // Predicated region
    $region14: #{tpu_custom_call.1} parent=1 // pred_check
      _
    $region15: #{tpu_custom_call.1} parent=1 // pred_check_branch
      %37 = sbr.rel (0) target = $region17
    $region16: #{tpu_custom_call.1} parent=1 // pred_region
      %39 = dma.done [#allocation4], 128
    $region17: #{tpu_custom_call.1} parent=1 // pred_fallthru
      _
    %40 = vsyncpa [#allocation3], 1
    %41 = vsyncpa [#allocation4], 1

</llo_original>
